<compile_context>
chip_gen: v5e
topology: v5e:2x2
jax: 0.10.0
libtpu: 0.0.40
codegen_flags: <defaults>
</compile_context>

<pallas_src>
import jax
import jax.numpy as jnp
from jax.experimental import pallas as pl
from jax.experimental.pallas import tpu as pltpu

FEAT_DIM = 2048
HID_DIM = 512
OUT_DIM = 256
BN_EPS = 1e-5

MAX_TS = 8192                      # cap on the spatial tile (lanes)
X_TILE_BUDGET = 12 * 1024 * 1024   # bytes for the double-buffered x tile


def _make_head_kernel(s, ts, ragged):
    """s: total spatial extent; ts: lane tile (multiple of 128); ragged: last
    tile extends past s and must be masked."""
    num_chunks = ts // 128

    def kernel(n_ref, x_ref, sel_ref, wrep_ref, gamma_ref, beta_ref, w2_ref,
               o_ref, pooled_acc):
        # n_ref:      (1,)           int32 SMEM scalar (real batch size)
        # x_ref:      (rows, ts)     streamed spatial tile, rows = N*C
        # sel_ref:    (N, rows)      f32 constant 0/1 sample-selection matrix
        # wrep_ref:   (rows, HID)    f32, row j = ((Wb@W1)/(H*W))[j % C, :]
        # gamma/beta: (1, HID)       f32
        # w2_ref:     (HID, OUT)     f32
        # o_ref:      (N, OUT)       f32 (resident across the reduction grid)
        # pooled_acc: (rows, 128)    f32 scratch, deferred lane reduction
        k = pl.program_id(0)
        last = pl.num_programs(0) - 1

        @pl.when(k == 0)
        def _init():
            pooled_acc[...] = jnp.zeros_like(pooled_acc)

        def accumulate(masked):
            # Per-step work: elementwise VPU adds of the ts/128 lane chunks
            # (cross-lane reduce deferred to the epilogue).
            acc = None
            for q in range(num_chunks):
                chunk = x_ref[:, q * 128:(q + 1) * 128].astype(jnp.float32)
                if masked:
                    col = (jax.lax.broadcasted_iota(jnp.int32, (1, 128), 1)
                           + (k * ts + q * 128))
                    chunk = jnp.where(col < s, chunk, 0.0)
                acc = chunk if acc is None else acc + chunk
            pooled_acc[...] += acc

        if ragged:
            @pl.when(k < last)
            def _steady():
                accumulate(False)

            @pl.when(k == last)
            def _tail():
                accumulate(True)
        else:
            accumulate(False)

        @pl.when(k == last)
        def _epilogue():
            inv_n = 1.0 / n_ref[0].astype(jnp.float32)

            # One cross-lane reduce for the spatial sum (1/(H*W) is folded
            # into Wrep along with Wb@W1).
            pooled_col = jnp.sum(pooled_acc[...], axis=-1, keepdims=True)

            # Fused backbone-projection + Linear(feat_dim, 512), all f32:
            #   h[i,:] = sum_c pooled[i,c] * Wfused[c,:]
            #          = (Sel @ (pooled_col * Wrep))[i,:]
            b = pooled_col * wrep_ref[...]                       # (rows, HID)
            h = jnp.dot(sel_ref[...], b,
                        preferred_element_type=jnp.float32)      # (N, HID)

            # BatchNorm1d(512), training mode, biased batch variance.
            s1 = jnp.sum(h, axis=0, keepdims=True)
            s2 = jnp.sum(h * h, axis=0, keepdims=True)
            mean = s1 * inv_n
            var = s2 * inv_n - mean * mean
            scale = gamma_ref[...] * jax.lax.rsqrt(var + BN_EPS)
            shift = beta_ref[...] - mean * scale

            # Fused BN affine + ReLU(inplace).
            hr = jnp.maximum(h * scale + shift, 0.0)

            # Linear(512, 256, bias=False), f32.
            o_ref[...] = jnp.dot(hr, w2_ref[...],
                                 preferred_element_type=jnp.float32)

    return kernel


def resnet_forward(x_nchw, params):
    """x_nchw: (N, C, H, W) float32/bfloat16. Returns (N, OUT_DIM) float32.

    For production throughput, batch N >= 128 (v5e) / 256 (v6e, v7x) rows per
    call so the epilogue matmuls fill the MXU.
    """
    n, c, hh, ww = x_nchw.shape
    s = hh * ww
    rows = n * c
    wb, w1, gamma, beta, w2 = params

    # --- host-side algebraic fusion (no nonlinearity between them) ---------
    # W_fused = (Wb @ W1) / (H*W), kept in f32 for precision parity.
    w_fused = (jnp.dot(wb, w1, preferred_element_type=jnp.float32)
               * (1.0 / float(s)))                                  # (C, HID)
    # Row-replicated weight and sample-selection matrix (tiny constants) so
    # the in-kernel channel regrouping is a single f32 dot.
    wrep = jnp.tile(w_fused, (n, 1))                                # (rows, HID)
    sel = jnp.repeat(jnp.eye(n, dtype=jnp.float32), c, axis=1)      # (N, rows)

    # --- x layout: free contiguous reshape, sublane-dense; NO host padding --
    x2 = x_nchw.reshape(rows, s)

    # --- spatial tile: largest 128-multiple under the VMEM budget ----------
    itemsize = jnp.dtype(x_nchw.dtype).itemsize
    max_ts = max(128, (X_TILE_BUDGET // (2 * rows * itemsize)) // 128 * 128)
    ts = min(max_ts, ((s + 127) // 128) * 128, MAX_TS)
    grid_k = (s + ts - 1) // ts
    ragged = (s % ts) != 0

    n_scalar = jnp.asarray([n], dtype=jnp.int32)

    out = pl.pallas_call(
        _make_head_kernel(s=s, ts=ts, ragged=ragged),
        out_shape=jax.ShapeDtypeStruct((n, OUT_DIM), jnp.float32),
        grid_spec=pltpu.PrefetchScalarGridSpec(
            num_scalar_prefetch=1,
            grid=(grid_k,),
            in_specs=[
                # x: streamed spatial tiles (double-buffered by Pallas).
                pl.BlockSpec((rows, ts), lambda k, nref: (0, k)),
                # constants / weights / BN params: resident.
                pl.BlockSpec((n, rows), lambda k, nref: (0, 0)),
                pl.BlockSpec((rows, HID_DIM), lambda k, nref: (0, 0)),
                pl.BlockSpec((1, HID_DIM), lambda k, nref: (0, 0)),
                pl.BlockSpec((1, HID_DIM), lambda k, nref: (0, 0)),
                pl.BlockSpec((HID_DIM, OUT_DIM), lambda k, nref: (0, 0)),
            ],
            out_specs=pl.BlockSpec((n, OUT_DIM), lambda k, nref: (0, 0)),
            scratch_shapes=[pltpu.VMEM((rows, 128), jnp.float32)],
        ),
        compiler_params=pltpu.CompilerParams(
            dimension_semantics=("arbitrary",),   # spatial reduction axis
            vmem_limit_bytes=32 * 1024 * 1024,
        ),
    )(n_scalar, x2, sel, wrep, gamma, beta, w2)

    return out


def resnet_forward_reference(x, params):
    """Pure-JAX reference of the same forward (for correctness checking)."""
    wb, w1, gamma, beta, w2 = params
    n, c, hh, ww = x.shape
    pooled = jnp.mean(x.reshape(n, c, hh * ww).astype(jnp.float32), axis=-1)
    feats = pooled @ wb
    h = feats @ w1
    mean = jnp.mean(h, axis=0, keepdims=True)
    var = jnp.mean((h - mean) ** 2, axis=0, keepdims=True)
    h = (h - mean) * jax.lax.rsqrt(var + BN_EPS) * gamma + beta
    h = jnp.maximum(h, 0.0)
    return h @ w2


def init_params(key, in_channels):
    k0, k1, k2 = jax.random.split(key, 3)
    # backbone stand-in projection: (C, FEAT_DIM)
    wb = jax.random.normal(k0, (in_channels, FEAT_DIM), jnp.float32) * (
        1.0 / jnp.sqrt(in_channels))
    # inv_head Linear(feat_dim, 512, bias=False)
    w1 = jax.random.normal(k1, (FEAT_DIM, HID_DIM), jnp.float32) * (
        1.0 / jnp.sqrt(FEAT_DIM))
    # BatchNorm1d(512): gamma=1, beta=0 (PyTorch default init)
    gamma = jnp.ones((1, HID_DIM), jnp.float32)
    beta = jnp.zeros((1, HID_DIM), jnp.float32)
    # inv_head Linear(512, 256, bias=False)
    w2 = jax.random.normal(k2, (HID_DIM, OUT_DIM), jnp.float32) * (
        1.0 / jnp.sqrt(HID_DIM))
    return wb, w1, gamma, beta, w2


if __name__ == "__main__":
    key = jax.random.PRNGKey(0)
    kx, kp = jax.random.split(key)

    # small, shape-consistent example: batch=2, channels=4, spatial=16x16
    N, C, H, W = 2, 4, 16, 16
    x = jax.random.normal(kx, (N, C, H, W), jnp.float32)
    params = init_params(kp, C)

    fwd = jax.jit(resnet_forward)
    out = fwd(x, params)
    out = jax.block_until_ready(out)

    assert out.shape == (N, OUT_DIM), out.shape
    assert out.dtype == jnp.float32, out.dtype
    assert bool(jnp.all(jnp.isfinite(out)))

    ref = resnet_forward_reference(x, params)
    max_err = float(jnp.max(jnp.abs(out - ref)))
    assert max_err < 1e-1, f"mismatch vs reference: {max_err}"

    print("KERNEL_OK")
</pallas_src>

<mosaic_0001>
module attributes {stable_mosaic.version = 11 : i64} {
  func.func @kernel(%arg0: i32, %arg1: memref<1xi32, #tpu.memory_space<smem>>, %arg2: memref<8x256xf32, #tpu.memory_space<vmem>>, %arg3: memref<2x8xf32, #tpu.memory_space<vmem>>, %arg4: memref<8x512xf32, #tpu.memory_space<vmem>>, %arg5: memref<1x512xf32, #tpu.memory_space<vmem>>, %arg6: memref<1x512xf32, #tpu.memory_space<vmem>>, %arg7: memref<512x256xf32, #tpu.memory_space<vmem>>, %arg8: memref<2x256xf32, #tpu.memory_space<vmem>>, %arg9: memref<8x128xf32, #tpu.memory_space<vmem>>) attributes {dimension_semantics = [#tpu.dimension_semantics<arbitrary>], iteration_bounds = array<i64: 1>, scalar_prefetch = 1 : i64, scratch_operands = 1 : i64, tpu.core_type = #tpu.core_type<tc>, window_params = [{transform_indices = @transform_0, window_bounds = array<i64: 8, 256>}, {pipeline_mode = #tpu.pipeline_mode<synchronous>, transform_indices = @transform_1, window_bounds = array<i64: 2, 8>}, {pipeline_mode = #tpu.pipeline_mode<synchronous>, transform_indices = @transform_2, window_bounds = array<i64: 8, 512>}, {pipeline_mode = #tpu.pipeline_mode<synchronous>, transform_indices = @transform_3, window_bounds = array<i64: 1, 512>}, {pipeline_mode = #tpu.pipeline_mode<synchronous>, transform_indices = @transform_4, window_bounds = array<i64: 1, 512>}, {pipeline_mode = #tpu.pipeline_mode<synchronous>, transform_indices = @transform_5, window_bounds = array<i64: 512, 256>}, {pipeline_mode = #tpu.pipeline_mode<synchronous>, transform_indices = @transform_6, window_bounds = array<i64: 2, 256>}]} {
    %c0_i32 = arith.constant 0 : i32
    %0 = arith.cmpi eq, %arg0, %c0_i32 : i32
    %1 = arith.extui %0 : i1 to i32
    %c0_i32_0 = arith.constant 0 : i32
    %2 = arith.cmpi ne, %1, %c0_i32_0 : i32
    scf.if %2 {
      %cst = arith.constant 0.000000e+00 : f32
      %12 = vector.broadcast %cst : f32 to vector<8x128xf32>
      %c0_9 = arith.constant 0 : index
      %c0_10 = arith.constant 0 : index
      %13 = vector.load %arg9[%c0_9, %c0_10] : memref<8x128xf32, #tpu.memory_space<vmem>>, vector<8x128xf32>
      tpu.vector_store %arg9[%c0_9, %c0_10], %12 {strides = array<i32>} : memref<8x128xf32, #tpu.memory_space<vmem>>, vector<8x128xf32>,
    } else {
    }
    %c0 = arith.constant 0 : index
    %c0_1 = arith.constant 0 : index
    %3 = vector.load %arg2[%c0, %c0_1] : memref<8x256xf32, #tpu.memory_space<vmem>>, vector<8x128xf32>
    %c0_2 = arith.constant 0 : index
    %c128 = arith.constant 128 : index
    %4 = vector.load %arg2[%c0_2, %c128] : memref<8x256xf32, #tpu.memory_space<vmem>>, vector<8x128xf32>
    %5 = arith.addf %3, %4 : vector<8x128xf32>
    %c0_3 = arith.constant 0 : index
    %c0_4 = arith.constant 0 : index
    %6 = vector.load %arg9[%c0_3, %c0_4] : memref<8x128xf32, #tpu.memory_space<vmem>>, vector<8x128xf32>
    %7 = arith.addf %6, %5 : vector<8x128xf32>
    %c0_5 = arith.constant 0 : index
    %c0_6 = arith.constant 0 : index
    %8 = vector.load %arg9[%c0_5, %c0_6] : memref<8x128xf32, #tpu.memory_space<vmem>>, vector<8x128xf32>
    tpu.vector_store %arg9[%c0_5, %c0_6], %7 {strides = array<i32>} : memref<8x128xf32, #tpu.memory_space<vmem>>, vector<8x128xf32>,
    %c0_i32_7 = arith.constant 0 : i32
    %9 = arith.cmpi eq, %arg0, %c0_i32_7 : i32
    %10 = arith.extui %9 : i1 to i32
    %c0_i32_8 = arith.constant 0 : i32
    %11 = arith.cmpi ne, %10, %c0_i32_8 : i32
    scf.if %11 {
      %c0_9 = arith.constant 0 : index
      %12 = memref.load %arg1[%c0_9] : memref<1xi32, #tpu.memory_space<smem>>
      %13 = arith.sitofp %12 : i32 to f32
      %cst = arith.constant 1.000000e+00 : f32
      %14 = arith.divf %cst, %13 : f32
      %c0_10 = arith.constant 0 : index
      %c0_11 = arith.constant 0 : index
      %15 = vector.load %arg9[%c0_10, %c0_11] : memref<8x128xf32, #tpu.memory_space<vmem>>, vector<8x128xf32>
      %cst_12 = arith.constant dense<0.000000e+00> : vector<8xf32>
      %16 = vector.multi_reduction <add>, %15, %cst_12 [1] : vector<8x128xf32> to vector<8xf32>
      %17 = vector.shape_cast %16 : vector<8xf32> to vector<8x1xf32>
      %c0_13 = arith.constant 0 : index
      %c0_14 = arith.constant 0 : index
      %18 = vector.load %arg4[%c0_13, %c0_14] : memref<8x512xf32, #tpu.memory_space<vmem>>, vector<8x512xf32>
      %19 = vector.broadcast %17 : vector<8x1xf32> to vector<8x512xf32>
      %20 = arith.mulf %19, %18 : vector<8x512xf32>
      %c0_15 = arith.constant 0 : index
      %c0_16 = arith.constant 0 : index
      %21 = vector.load %arg3[%c0_15, %c0_16] : memref<2x8xf32, #tpu.memory_space<vmem>>, vector<2x8xf32>
      %cst_17 = arith.constant dense<0.000000e+00> : vector<2x512xf32>
      %22 = tpu.matmul %21, %20, %cst_17 {dimension_numbers = #tpu.dot_dimension_numbers<[1], [0], [0], [1], [0, 0, 1, 1], [], []>} : vector<2x8xf32>, vector<8x512xf32>, vector<2x512xf32> -> vector<2x512xf32>
      %cst_18 = arith.constant dense<0.000000e+00> : vector<512xf32>
      %23 = vector.multi_reduction <add>, %22, %cst_18 [0] : vector<2x512xf32> to vector<512xf32>
      %24 = vector.shape_cast %23 : vector<512xf32> to vector<1x512xf32>
      %25 = arith.mulf %22, %22 : vector<2x512xf32>
      %cst_19 = arith.constant dense<0.000000e+00> : vector<512xf32>
      %26 = vector.multi_reduction <add>, %25, %cst_19 [0] : vector<2x512xf32> to vector<512xf32>
      %27 = vector.shape_cast %26 : vector<512xf32> to vector<1x512xf32>
      %28 = vector.broadcast %14 : f32 to vector<1x512xf32>
      %29 = arith.mulf %24, %28 : vector<1x512xf32>
      %30 = vector.broadcast %14 : f32 to vector<1x512xf32>
      %31 = arith.mulf %27, %30 : vector<1x512xf32>
      %32 = arith.mulf %29, %29 : vector<1x512xf32>
      %33 = arith.subf %31, %32 : vector<1x512xf32>
      %c0_20 = arith.constant 0 : index
      %c0_21 = arith.constant 0 : index
      %34 = vector.load %arg5[%c0_20, %c0_21] : memref<1x512xf32, #tpu.memory_space<vmem>>, vector<1x512xf32>
      %cst_22 = arith.constant 9.99999974E-6 : f32
      %35 = vector.broadcast %cst_22 : f32 to vector<1x512xf32>
      %36 = arith.addf %33, %35 : vector<1x512xf32>
      %37 = math.rsqrt %36 : vector<1x512xf32>
      %38 = arith.mulf %34, %37 : vector<1x512xf32>
      %c0_23 = arith.constant 0 : index
      %c0_24 = arith.constant 0 : index
      %39 = vector.load %arg6[%c0_23, %c0_24] : memref<1x512xf32, #tpu.memory_space<vmem>>, vector<1x512xf32>
      %40 = arith.mulf %29, %38 : vector<1x512xf32>
      %41 = arith.subf %39, %40 : vector<1x512xf32>
      %42 = vector.broadcast %38 : vector<1x512xf32> to vector<2x512xf32>
      %43 = arith.mulf %22, %42 : vector<2x512xf32>
      %44 = vector.broadcast %41 : vector<1x512xf32> to vector<2x512xf32>
      %45 = arith.addf %43, %44 : vector<2x512xf32>
      %cst_25 = arith.constant 0.000000e+00 : f32
      %46 = vector.broadcast %cst_25 : f32 to vector<2x512xf32>
      %47 = arith.maximumf %45, %46 : vector<2x512xf32>
      %c0_26 = arith.constant 0 : index
      %c0_27 = arith.constant 0 : index
      %48 = vector.load %arg7[%c0_26, %c0_27] : memref<512x256xf32, #tpu.memory_space<vmem>>, vector<512x256xf32>
      %cst_28 = arith.constant dense<0.000000e+00> : vector<2x256xf32>
      %49 = tpu.matmul %47, %48, %cst_28 {dimension_numbers = #tpu.dot_dimension_numbers<[1], [0], [0], [1], [0, 0, 1, 1], [], []>} : vector<2x512xf32>, vector<512x256xf32>, vector<2x256xf32> -> vector<2x256xf32>
      %c0_29 = arith.constant 0 : index
      %c0_30 = arith.constant 0 : index
      %50 = vector.load %arg8[%c0_29, %c0_30] : memref<2x256xf32, #tpu.memory_space<vmem>>, vector<2x256xf32>
      tpu.vector_store %arg8[%c0_29, %c0_30], %49 {strides = array<i32>} : memref<2x256xf32, #tpu.memory_space<vmem>>, vector<2x256xf32>,
    } else {
    }
    return
  }
  func.func @transform_0(%arg0: i32, %arg1: memref<1xi32, #tpu.memory_space<smem>>) -> (i32, i32) {
    %c0_i32 = arith.constant 0 : i32
    %c0_i32_0 = arith.constant 0 : i32
    return %c0_i32, %arg0 : i32, i32
  }
  func.func @transform_1(%arg0: i32, %arg1: memref<1xi32, #tpu.memory_space<smem>>) -> (i32, i32) {
    %c0_i32 = arith.constant 0 : i32
    %c0_i32_0 = arith.constant 0 : i32
    %c0_i32_1 = arith.constant 0 : i32
    return %c0_i32, %c0_i32_0 : i32, i32
  }
  func.func @transform_2(%arg0: i32, %arg1: memref<1xi32, #tpu.memory_space<smem>>) -> (i32, i32) {
    %c0_i32 = arith.constant 0 : i32
    %c0_i32_0 = arith.constant 0 : i32
    %c0_i32_1 = arith.constant 0 : i32
    return %c0_i32, %c0_i32_0 : i32, i32
  }
  func.func @transform_3(%arg0: i32, %arg1: memref<1xi32, #tpu.memory_space<smem>>) -> (i32, i32) {
    %c0_i32 = arith.constant 0 : i32
    %c0_i32_0 = arith.constant 0 : i32
    %c0_i32_1 = arith.constant 0 : i32
    return %c0_i32, %c0_i32_0 : i32, i32
  }
  func.func @transform_4(%arg0: i32, %arg1: memref<1xi32, #tpu.memory_space<smem>>) -> (i32, i32) {
    %c0_i32 = arith.constant 0 : i32
    %c0_i32_0 = arith.constant 0 : i32
    %c0_i32_1 = arith.constant 0 : i32
    return %c0_i32, %c0_i32_0 : i32, i32
  }
  func.func @transform_5(%arg0: i32, %arg1: memref<1xi32, #tpu.memory_space<smem>>) -> (i32, i32) {
    %c0_i32 = arith.constant 0 : i32
    %c0_i32_0 = arith.constant 0 : i32
    %c0_i32_1 = arith.constant 0 : i32
    return %c0_i32, %c0_i32_0 : i32, i32
  }
  func.func @transform_6(%arg0: i32, %arg1: memref<1xi32, #tpu.memory_space<smem>>) -> (i32, i32) {
    %c0_i32 = arith.constant 0 : i32
    %c0_i32_0 = arith.constant 0 : i32
    %c0_i32_1 = arith.constant 0 : i32
    return %c0_i32, %c0_i32_0 : i32, i32
  }
}

</mosaic_0001>

<llo_original>
// kernel: tile.9
$region0: #{tile.9}
  %s0 = inlined_call_operand.vmem [shape: f32[2,4,512], index: 0, kind: input, shape index: {}]
  %s1 = inlined_call_operand.vmem [shape: f32[8,512], index: 1, kind: output, shape index: {}]
  $region1: #{tile.9} parent=0
    #allocation0 [shape = 'u8[32768]{0}', space=vmem, size = 0x8000, scoped, tag = 'scoped mem for input reshape']
    %s3 = ssub.s32 16, 1
    %s4 = scalar_lea.vmem %s0, 28
    %v5 = vld [vmem:[%s4] sm:%s3]
    %s6 = scalar_lea.vmem [#allocation0], 56
    %7 = vst [vmem:[%s6] sm:%s3] %v5
    %s8 = scalar_lea.vmem %s0, 24
    %v9 = vld [vmem:[%s8] sm:%s3]
    %s10 = scalar_lea.vmem [#allocation0], 48
    %11 = vst [vmem:[%s10] sm:%s3] %v9
    %s12 = scalar_lea.vmem %s0, 20
    %v13 = vld [vmem:[%s12] sm:%s3]
    %s14 = scalar_lea.vmem [#allocation0], 40
    %15 = vst [vmem:[%s14] sm:%s3] %v13
    %s16 = scalar_lea.vmem %s0, 16
    %v17 = vld [vmem:[%s16] sm:%s3]
    %s18 = scalar_lea.vmem [#allocation0], 32
    %19 = vst [vmem:[%s18] sm:%s3] %v17
    %s20 = scalar_lea.vmem %s0, 12
    %v21 = vld [vmem:[%s20] sm:%s3]
    %s22 = scalar_lea.vmem [#allocation0], 24
    %23 = vst [vmem:[%s22] sm:%s3] %v21
    %s24 = scalar_lea.vmem %s0, 8
    %v25 = vld [vmem:[%s24] sm:%s3]
    %s26 = scalar_lea.vmem [#allocation0], 16
    %27 = vst [vmem:[%s26] sm:%s3] %v25
    %s28 = scalar_lea.vmem %s0, 4
    %v29 = vld [vmem:[%s28] sm:%s3]
    %s30 = scalar_lea.vmem [#allocation0], 8
    %31 = vst [vmem:[%s30] sm:%s3] %v29
    %v32 = vld [vmem:[%s0] sm:%s3]
    %33 = vst [vmem:[#allocation0] sm:%s3] %v32
    %v34 = vld [vmem:[#allocation0] sm:$0xf]
    %35 = vst [vmem:[%s1] sm:$0xf] %v34
    %s36 = scalar_lea.vmem [#allocation0], 8
    %v37 = vld [vmem:[%s36] sm:$0xf]
    %s38 = scalar_lea.vmem %s1, 8
    %39 = vst [vmem:[%s38] sm:$0xf] %v37
    %s40 = scalar_lea.vmem [#allocation0], 16
    %v41 = vld [vmem:[%s40] sm:$0xf]
    %s42 = scalar_lea.vmem %s1, 16
    %43 = vst [vmem:[%s42] sm:$0xf] %v41
    %s44 = scalar_lea.vmem [#allocation0], 24
    %v45 = vld [vmem:[%s44] sm:$0xf]
    %s46 = scalar_lea.vmem %s1, 24
    %47 = vst [vmem:[%s46] sm:$0xf] %v45
    %s48 = scalar_lea.vmem [#allocation0], 32
    %v49 = vld [vmem:[%s48] sm:$0xf]
    %s50 = scalar_lea.vmem %s1, 4
    %51 = vst [vmem:[%s50] sm:$0xf] %v49
    %s52 = scalar_lea.vmem [#allocation0], 40
    %v53 = vld [vmem:[%s52] sm:$0xf]
    %s54 = scalar_lea.vmem %s1, 12
    %55 = vst [vmem:[%s54] sm:$0xf] %v53
    %s56 = scalar_lea.vmem [#allocation0], 48
    %v57 = vld [vmem:[%s56] sm:$0xf]
    %s58 = scalar_lea.vmem %s1, 20
    %59 = vst [vmem:[%s58] sm:$0xf] %v57
    %s60 = scalar_lea.vmem [#allocation0], 56
    %v61 = vld [vmem:[%s60] sm:$0xf]
    %s62 = scalar_lea.vmem %s1, 28
    %63 = vst [vmem:[%s62] sm:$0xf] %v61

// kernel: resnet_forward.1
$region0: #{resnet_forward.1}
  #allocation0 [shape = 'u32[]', space=smem, size = 0x4, offset = 0x4, fixed_abs, tag = 'smem constant byte address 0x4 - core index']
  #allocation1 [shape = 'u32[72,128]{1,0:T(1,128)}', space=vmem, size = 0x9000, scoped, tag = 'internal scratch']
  #allocation2 [shape = 'f32[8,128]{1,0:T(8,128)}', space=vmem, size = 0x1000, scoped, tag = 'scratch operand']
  #allocation3 [shape = 's32[1]{0}', space=sflag, size = 0x4, scoped, tag = 'scoped memory for resnet_forward.1']
  #allocation4 [shape = 's32[1]{0:T(128)S(6)}', space=smem, size = 0x200, scoped, tag = 'prefetched SMEM operand 0']
  %s0 = inlined_call_operand.<no memory space> [shape: s32[1], index: 0, kind: input, shape index: {}]
  %s1 = inlined_call_operand.vmem [shape: f32[8,256], index: 1, kind: input, shape index: {}]
  %s2 = inlined_call_operand.vmem [shape: f32[2,8], index: 2, kind: input, shape index: {}]
  %s3 = inlined_call_operand.vmem [shape: f32[8,512], index: 3, kind: input, shape index: {}]
  %s4 = inlined_call_operand.vmem [shape: f32[1,512], index: 4, kind: input, shape index: {}]
  %s5 = inlined_call_operand.vmem [shape: f32[1,512], index: 5, kind: input, shape index: {}]
  %s6 = inlined_call_operand.vmem [shape: f32[512,256], index: 6, kind: input, shape index: {}]
  %s7 = inlined_call_operand.hbm [shape: f32[2,256], index: 7, kind: output, shape index: {}]
  %s8 = sld [smem:[#allocation0]]
  $region42: #{resnet_forward.1} parent=0
    _
  %s10 = ssub.s32 1, %s8
  %s11 = scalar_select 0, %s10, %s8
  %12 = sst [smem:[#allocation4]] %s0
  $region1: #{resnet_forward.1} parent=0
    #allocation5 [shape = 'u8[2048]{0}', space=vmem, size = 0x800, scoped, tag = 'output window, operand 0, single buffered']
    #allocation6 [shape = 's32[1]{0}', space=sflag, size = 0x4, scoped, tag = 'scoped memory for resnet_forward.1']
    %13 = vsyncpa [#allocation6], 0
    // Predicated region
    $region2: #{resnet_forward.1} parent=1 // pred_check
      _
    $region3: #{resnet_forward.1} parent=1 // pred_check_branch
      %15 = sbr.rel (0) target = $region5
    $region4: #{resnet_forward.1} parent=1 // pred_region
      _
    $region5: #{resnet_forward.1} parent=1 // pred_fallthru
      _
    // Predicated region
    $region6: #{resnet_forward.1} parent=1 // pred_check
      _
    $region7: #{resnet_forward.1} parent=1 // pred_check_branch
      %17 = sbr.rel (0) target = $region9
    $region8: #{resnet_forward.1} parent=1 // pred_region
      _
    $region9: #{resnet_forward.1} parent=1 // pred_fallthru
      _
    // Predicated region
    $region10: #{resnet_forward.1} parent=1 // pred_check
      _
    $region11: #{resnet_forward.1} parent=1 // pred_check_branch
      %19 = sbr.rel (0) target = $region13
    $region12: #{resnet_forward.1} parent=1 // pred_region
      _
    $region13: #{resnet_forward.1} parent=1 // pred_fallthru
      _
    // Predicated region
    $region14: #{resnet_forward.1} parent=1 // pred_check
      _
    $region15: #{resnet_forward.1} parent=1 // pred_check_branch
      %21 = sbr.rel (0) target = $region17
    $region16: #{resnet_forward.1} parent=1 // pred_region
      _
    $region17: #{resnet_forward.1} parent=1 // pred_fallthru
      _
    // Predicated region
    $region18: #{resnet_forward.1} parent=1 // pred_check
      _
    $region19: #{resnet_forward.1} parent=1 // pred_check_branch
      %23 = sbr.rel (0) target = $region21
    $region20: #{resnet_forward.1} parent=1 // pred_region
      _
    $region21: #{resnet_forward.1} parent=1 // pred_fallthru
      _
    // Predicated region
    $region22: #{resnet_forward.1} parent=1 // pred_check
      _
    $region23: #{resnet_forward.1} parent=1 // pred_check_branch
      %25 = sbr.rel (0) target = $region25
    $region24: #{resnet_forward.1} parent=1 // pred_region
      _
    $region25: #{resnet_forward.1} parent=1 // pred_fallthru
      _
    %p26 = scmp.eq.s32.totalorder 0, 0
    // Predicated region
    $region26: #{resnet_forward.1} parent=1 // pred_check
      %p27 = pneg %p26
    $region27: #{resnet_forward.1} parent=1 // pred_check_branch
      %29 = sbr.rel (%p27) target = $region29
    $region28: #{resnet_forward.1} parent=1 // pred_region
      %30 = vst [vmem:[#allocation2] sm:$0xff] 0.0
    $region29: #{resnet_forward.1} parent=1 // pred_fallthru
      _
    %v31 = vld [vmem:[%s1] sm:$0xff]
    %v32 = vld [vmem:[%s1 + $0x8] sm:$0xff]
    %v33 = vadd.f32 %v31, %v32
    %v34 = vld [vmem:[#allocation2] sm:$0xff]
    %v35 = vadd.f32 %v34, %v33
    %36 = vst [vmem:[#allocation2] sm:$0xff] %v35
    // Predicated region
    $region30: #{resnet_forward.1} parent=1 // pred_check
      %p37 = pneg %p26
    $region31: #{resnet_forward.1} parent=1 // pred_check_branch
      %39 = sbr.rel (%p37) target = $region33
    $region32: #{resnet_forward.1} parent=1 // pred_region
      %s40 = sld [smem:[#allocation4]]
      %s41 = scvt.s32.f32 %s40
      %v42 = vstv %s41
      %v43 = vrcp.pop %v42
      %v44 = vmul.f32 %v42, %v43
      %v45 = vsub.f32 1.0, %v44
      %v46 = vmul.f32 %v43, %v45
      %v47 = vadd.f32 %v43, %v46
      %vm48 = vweird.f32 %v42
      %vm49 = vweird.f32 %v43
      %vm50 = vmor %vm48, %vm49
      %v51 = vsel %vm50, %v43, %v47
      %v52 = vand.u32 2147483647, %v42
      %vm53 = vcmp.eq.f32.partialorder %v52, 8.507059e+37
      %v54 = vand.u32 %v42, 2147483648
      %v55 = vor.u32 1.1754944e-38, %v54
      %v56 = vsel %vm53, %v55, %v51
      %s57 = vtos %v56
      %v58 = vld [vmem:[#allocation2] sm:$0xff]
      %59 = vadd.xlane.f32.xlu0 %v58
      %v60 = vpop.xlane.xlu0 %59
      %v61 = vld [vmem:[%s3] sm:$0xff]
      %v62 = vld [vmem:[%s3 + $0x8] sm:$0xff]
      %v63 = vld [vmem:[%s3 + $0x10] sm:$0xff]
      %v64 = vld [vmem:[%s3 + $0x18] sm:$0xff]
      %v65 = vmul.f32 %v60, %v61
      %v66 = vmul.f32 %v60, %v62
      %v67 = vmul.f32 %v60, %v63
      %v68 = vmul.f32 %v60, %v64
      %v69 = vld [vmem:[%s2] sm:$0x3]
      %vm70 = vcmask 64512
      %v72 = vsel %vm70, %v69, 0
      %74 = vmatpush.msra.mxu0 0.0
      %75 = vmatpush.msra.mxu0 0.0
      %76 = vmatpush.msra.mxu0 0.0
      %77 = vmatpush.msra.mxu0 0.0
      %78 = vmatpush.msra.mxu0 0.0
      %79 = vmatpush.msra.mxu0 0.0
      %80 = vmatpush.msra.mxu0 0.0
      %81 = vmatpush.msra.mxu0 0.0
      %82 = vmatpush.msra.mxu0 0.0
      %83 = vmatpush.msra.mxu0 0.0
      %84 = vmatpush.msra.mxu0 0.0
      %85 = vmatpush.msra.mxu0 0.0
      %86 = vmatpush.msra.mxu0 0.0
      %87 = vmatpush.msra.mxu0 0.0
      %88 = vmatpush.msra.mxu0 0.0
      %89 = vmatpush.msra.mxu0 %v65
      %90 = vmatmul.f32.gmra.mxu0 %v72
      %v91 = vpop.f32.mrf.mxu0
      %v92 = vadd.f32 0.0, %v91
      %93 = vdwg.mxu0
      %94 = vmatpush.msra.mxu0 0.0
      %95 = vmatpush.msra.mxu0 0.0
      %96 = vmatpush.msra.mxu0 0.0
      %97 = vmatpush.msra.mxu0 0.0
      %98 = vmatpush.msra.mxu0 0.0
      %99 = vmatpush.msra.mxu0 0.0
      %100 = vmatpush.msra.mxu0 0.0
      %101 = vmatpush.msra.mxu0 0.0
      %102 = vmatpush.msra.mxu0 0.0
      %103 = vmatpush.msra.mxu0 0.0
      %104 = vmatpush.msra.mxu0 0.0
      %105 = vmatpush.msra.mxu0 0.0
      %106 = vmatpush.msra.mxu0 0.0
      %107 = vmatpush.msra.mxu0 0.0
      %108 = vmatpush.msra.mxu0 0.0
      %109 = vmatpush.msra.mxu0 %v66
      %110 = vmatmul.f32.gmra.mxu0 %v72
      %v111 = vpop.f32.mrf.mxu0
      %v112 = vadd.f32 0.0, %v111
      %113 = vdwg.mxu0
      %114 = vmatpush.msra.mxu0 0.0
      %115 = vmatpush.msra.mxu0 0.0
      %116 = vmatpush.msra.mxu0 0.0
      %117 = vmatpush.msra.mxu0 0.0
      %118 = vmatpush.msra.mxu0 0.0
      %119 = vmatpush.msra.mxu0 0.0
      %120 = vmatpush.msra.mxu0 0.0
      %121 = vmatpush.msra.mxu0 0.0
      %122 = vmatpush.msra.mxu0 0.0
      %123 = vmatpush.msra.mxu0 0.0
      %124 = vmatpush.msra.mxu0 0.0
      %125 = vmatpush.msra.mxu0 0.0
      %126 = vmatpush.msra.mxu0 0.0
      %127 = vmatpush.msra.mxu0 0.0
      %128 = vmatpush.msra.mxu0 0.0
      %129 = vmatpush.msra.mxu0 %v67
      %130 = vmatmul.f32.gmra.mxu0 %v72
      %v131 = vpop.f32.mrf.mxu0
      %v132 = vadd.f32 0.0, %v131
      %133 = vdwg.mxu0
      %134 = vmatpush.msra.mxu0 0.0
      %135 = vmatpush.msra.mxu0 0.0
      %136 = vmatpush.msra.mxu0 0.0
      %137 = vmatpush.msra.mxu0 0.0
      %138 = vmatpush.msra.mxu0 0.0
      %139 = vmatpush.msra.mxu0 0.0
      %140 = vmatpush.msra.mxu0 0.0
      %141 = vmatpush.msra.mxu0 0.0
      %142 = vmatpush.msra.mxu0 0.0
      %143 = vmatpush.msra.mxu0 0.0
      %144 = vmatpush.msra.mxu0 0.0
      %145 = vmatpush.msra.mxu0 0.0
      %146 = vmatpush.msra.mxu0 0.0
      %147 = vmatpush.msra.mxu0 0.0
      %148 = vmatpush.msra.mxu0 0.0
      %149 = vmatpush.msra.mxu0 %v68
      %150 = vmatmul.f32.gmra.mxu0 %v72
      %v151 = vpop.f32.mrf.mxu0
      %v152 = vadd.f32 0.0, %v151
      %153 = vdwg.mxu0
      %vm154 = vcmask 1041408
      %v155 = vsel %vm154, %v92, 0.0
      %v156 = vrot.slane %v155, 4
      %v157 = vadd.f32 %v155, %v156
      %v158 = vrot.slane %v157, 2
      %v159 = vadd.f32 %v157, %v158
      %v160 = vrot.slane %v159, 1
      %v161 = vadd.f32 %v159, %v160
      %v162 = vsel %vm154, %v112, 0.0
      %v163 = vrot.slane %v162, 4
      %v164 = vadd.f32 %v162, %v163
      %v165 = vrot.slane %v164, 2
      %v166 = vadd.f32 %v164, %v165
      %v167 = vrot.slane %v166, 1
      %v168 = vadd.f32 %v166, %v167
      %v169 = vsel %vm154, %v132, 0.0
      %v170 = vrot.slane %v169, 4
      %v171 = vadd.f32 %v169, %v170
      %v172 = vrot.slane %v171, 2
      %v173 = vadd.f32 %v171, %v172
      %v174 = vrot.slane %v173, 1
      %v175 = vadd.f32 %v173, %v174
      %v176 = vsel %vm154, %v152, 0.0
      %v177 = vrot.slane %v176, 4
      %v178 = vadd.f32 %v176, %v177
      %v179 = vrot.slane %v178, 2
      %v180 = vadd.f32 %v178, %v179
      %v181 = vrot.slane %v180, 1
      %v182 = vadd.f32 %v180, %v181
      %v183 = vmul.f32 %v92, %v92
      %v184 = vmul.f32 %v112, %v112
      %v185 = vmul.f32 %v132, %v132
      %v186 = vmul.f32 %v152, %v152
      %v187 = vsel %vm154, %v183, 0.0
      %v188 = vrot.slane %v187, 4
      %v189 = vadd.f32 %v187, %v188
      %v190 = vrot.slane %v189, 2
      %v191 = vadd.f32 %v189, %v190
      %v192 = vrot.slane %v191, 1
      %v193 = vadd.f32 %v191, %v192
      %v194 = vsel %vm154, %v184, 0.0
      %v195 = vrot.slane %v194, 4
      %v196 = vadd.f32 %v194, %v195
      %v197 = vrot.slane %v196, 2
      %v198 = vadd.f32 %v196, %v197
      %v199 = vrot.slane %v198, 1
      %v200 = vadd.f32 %v198, %v199
      %v201 = vsel %vm154, %v185, 0.0
      %v202 = vrot.slane %v201, 4
      %v203 = vadd.f32 %v201, %v202
      %v204 = vrot.slane %v203, 2
      %v205 = vadd.f32 %v203, %v204
      %v206 = vrot.slane %v205, 1
      %v207 = vadd.f32 %v205, %v206
      %v208 = vsel %vm154, %v186, 0.0
      %v209 = vrot.slane %v208, 4
      %v210 = vadd.f32 %v208, %v209
      %v211 = vrot.slane %v210, 2
      %v212 = vadd.f32 %v210, %v211
      %v213 = vrot.slane %v212, 1
      %v214 = vadd.f32 %v212, %v213
      %v215 = vstv %s57
      %v216 = vmul.f32 %v161, %v215
      %v217 = vmul.f32 %v168, %v215
      %v218 = vmul.f32 %v175, %v215
      %v219 = vmul.f32 %v182, %v215
      %v220 = vmul.f32 %v193, %v215
      %v221 = vmul.f32 %v200, %v215
      %v222 = vmul.f32 %v207, %v215
      %v223 = vmul.f32 %v214, %v215
      %v224 = vmul.f32 %v216, %v216
      %v225 = vmul.f32 %v217, %v217
      %v226 = vmul.f32 %v218, %v218
      %v227 = vmul.f32 %v219, %v219
      %v228 = vsub.f32 %v220, %v224
      %v229 = vsub.f32 %v221, %v225
      %v230 = vsub.f32 %v222, %v226
      %v231 = vsub.f32 %v223, %v227
      %v232 = vld [vmem:[%s4] sm:$0xf]
      %v233 = vadd.f32 %v228, 1e-05
      %v234 = vadd.f32 %v229, 1e-05
      %v235 = vadd.f32 %v230, 1e-05
      %v236 = vadd.f32 %v231, 1e-05
      %v237 = vrsqrt.pop %v233
      %v238 = vmul.f32 %v237, %v233
      %v239 = vmul.f32 %v238, %v237
      %v240 = vmul.f32 0.5, %v239
      %v241 = vsub.f32 1.5, %v240
      %v242 = vmul.f32 %v237, %v241
      %vm243 = vweird.f32 %v233
      %vm244 = vweird.f32 %v237
      %vm245 = vmor %vm243, %vm244
      %v246 = vsel %vm245, %v237, %v242
      %v247 = vrsqrt.pop %v234
      %v248 = vmul.f32 %v247, %v234
      %v249 = vmul.f32 %v248, %v247
      %v250 = vmul.f32 0.5, %v249
      %v251 = vsub.f32 1.5, %v250
      %v252 = vmul.f32 %v247, %v251
      %vm253 = vweird.f32 %v234
      %vm254 = vweird.f32 %v247
      %vm255 = vmor %vm253, %vm254
      %v256 = vsel %vm255, %v247, %v252
      %v257 = vrsqrt.pop %v235
      %v258 = vmul.f32 %v257, %v235
      %v259 = vmul.f32 %v258, %v257
      %v260 = vmul.f32 0.5, %v259
      %v261 = vsub.f32 1.5, %v260
      %v262 = vmul.f32 %v257, %v261
      %vm263 = vweird.f32 %v235
      %vm264 = vweird.f32 %v257
      %vm265 = vmor %vm263, %vm264
      %v266 = vsel %vm265, %v257, %v262
      %v267 = vrsqrt.pop %v236
      %v268 = vmul.f32 %v267, %v236
      %v269 = vmul.f32 %v268, %v267
      %v270 = vmul.f32 0.5, %v269
      %v271 = vsub.f32 1.5, %v270
      %v272 = vmul.f32 %v267, %v271
      %vm273 = vweird.f32 %v236
      %vm274 = vweird.f32 %v267
      %vm275 = vmor %vm273, %vm274
      %v276 = vsel %vm275, %v267, %v272
      %v281 = vrot.slane %v256, 7
      %v282 = vrot.slane %v266, 6
      %v283 = vrot.slane %v276, 5
      %vm284 = vcmask 1040384
      %v285 = vsel %vm284, %v246, %v281
      %vm286 = vcmask 1042434
      %v287 = vsel %vm286, %v282, %v283
      %v288 = vsel %vm154, %v285, %v287
      %v290 = vmul.f32 %v232, %v288
      %v291 = vld [vmem:[%s5] sm:$0xf]
      %v293 = vperm.slane %v290, 0
      %v294 = vperm.slane %v290, 1
      %v295 = vperm.slane %v290, 2
      %v296 = vperm.slane %v290, 3
      %v301 = vmul.f32 %v216, %v293
      %v302 = vmul.f32 %v217, %v294
      %v303 = vmul.f32 %v218, %v295
      %v304 = vmul.f32 %v219, %v296
      %v309 = vrot.slane %v302, 7
      %v310 = vrot.slane %v303, 6
      %v311 = vrot.slane %v304, 5
      %v312 = vsel %vm284, %v301, %v309
      %v313 = vsel %vm286, %v310, %v311
      %v314 = vsel %vm154, %v312, %v313
      %v316 = vsub.f32 %v291, %v314
      %v317 = vmul.f32 %v92, %v293
      %v318 = vmul.f32 %v112, %v294
      %v319 = vmul.f32 %v132, %v295
      %v320 = vmul.f32 %v152, %v296
      %v322 = vperm.slane %v316, 0
      %v323 = vperm.slane %v316, 1
      %v324 = vperm.slane %v316, 2
      %v325 = vperm.slane %v316, 3
      %v330 = vadd.f32 %v317, %v322
      %v331 = vadd.f32 %v318, %v323
      %v332 = vadd.f32 %v319, %v324
      %v333 = vadd.f32 %v320, %v325
      %v334 = vmax.f32 %v330, 0.0
      %v335 = vmax.f32 %v331, 0.0
      %v336 = vmax.f32 %v332, 0.0
      %v337 = vmax.f32 %v333, 0.0
      %v338 = vld [vmem:[%s6] sm:$0xff]
      %v339 = vld [vmem:[%s6 + $0x8] sm:$0xff]
      %v340 = vld [vmem:[%s6 + $0x10] sm:$0xff]
      %v341 = vld [vmem:[%s6 + $0x18] sm:$0xff]
      %v342 = vld [vmem:[%s6 + $0x20] sm:$0xff]
      %v343 = vld [vmem:[%s6 + $0x28] sm:$0xff]
      %v344 = vld [vmem:[%s6 + $0x30] sm:$0xff]
      %v345 = vld [vmem:[%s6 + $0x38] sm:$0xff]
      %v346 = vld [vmem:[%s6 + $0x40] sm:$0xff]
      %v347 = vld [vmem:[%s6 + $0x48] sm:$0xff]
      %v348 = vld [vmem:[%s6 + $0x50] sm:$0xff]
      %v349 = vld [vmem:[%s6 + $0x58] sm:$0xff]
      %v350 = vld [vmem:[%s6 + $0x60] sm:$0xff]
      %v351 = vld [vmem:[%s6 + $0x68] sm:$0xff]
      %v352 = vld [vmem:[%s6 + $0x70] sm:$0xff]
      %v353 = vld [vmem:[%s6 + $0x78] sm:$0xff]
      %v354 = vld [vmem:[%s6 + $0x80] sm:$0xff]
      %v355 = vld [vmem:[%s6 + $0x88] sm:$0xff]
      %v356 = vld [vmem:[%s6 + $0x90] sm:$0xff]
      %v357 = vld [vmem:[%s6 + $0x98] sm:$0xff]
      %v358 = vld [vmem:[%s6 + $0xa0] sm:$0xff]
      %v359 = vld [vmem:[%s6 + $0xa8] sm:$0xff]
      %v360 = vld [vmem:[%s6 + $0xb0] sm:$0xff]
      %v361 = vld [vmem:[%s6 + $0xb8] sm:$0xff]
      %v362 = vld [vmem:[%s6 + $0xc0] sm:$0xff]
      %v363 = vld [vmem:[%s6 + $0xc8] sm:$0xff]
      %v364 = vld [vmem:[%s6 + $0xd0] sm:$0xff]
      %v365 = vld [vmem:[%s6 + $0xd8] sm:$0xff]
      %v366 = vld [vmem:[%s6 + $0xe0] sm:$0xff]
      %v367 = vld [vmem:[%s6 + $0xe8] sm:$0xff]
      %v368 = vld [vmem:[%s6 + $0xf0] sm:$0xff]
      %v369 = vld [vmem:[%s6 + $0xf8] sm:$0xff]
      %v370 = vld [vmem:[%s6 + $0x100] sm:$0xff]
      %v371 = vld [vmem:[%s6 + $0x108] sm:$0xff]
      %v372 = vld [vmem:[%s6 + $0x110] sm:$0xff]
      %v373 = vld [vmem:[%s6 + $0x118] sm:$0xff]
      %v374 = vld [vmem:[%s6 + $0x120] sm:$0xff]
      %v375 = vld [vmem:[%s6 + $0x128] sm:$0xff]
      %v376 = vld [vmem:[%s6 + $0x130] sm:$0xff]
      %v377 = vld [vmem:[%s6 + $0x138] sm:$0xff]
      %v378 = vld [vmem:[%s6 + $0x140] sm:$0xff]
      %v379 = vld [vmem:[%s6 + $0x148] sm:$0xff]
      %v380 = vld [vmem:[%s6 + $0x150] sm:$0xff]
      %v381 = vld [vmem:[%s6 + $0x158] sm:$0xff]
      %v382 = vld [vmem:[%s6 + $0x160] sm:$0xff]
      %v383 = vld [vmem:[%s6 + $0x168] sm:$0xff]
      %v384 = vld [vmem:[%s6 + $0x170] sm:$0xff]
      %v385 = vld [vmem:[%s6 + $0x178] sm:$0xff]
      %v386 = vld [vmem:[%s6 + $0x180] sm:$0xff]
      %v387 = vld [vmem:[%s6 + $0x188] sm:$0xff]
      %v388 = vld [vmem:[%s6 + $0x190] sm:$0xff]
      %v389 = vld [vmem:[%s6 + $0x198] sm:$0xff]
      %v390 = vld [vmem:[%s6 + $0x1a0] sm:$0xff]
      %v391 = vld [vmem:[%s6 + $0x1a8] sm:$0xff]
      %v392 = vld [vmem:[%s6 + $0x1b0] sm:$0xff]
      %v393 = vld [vmem:[%s6 + $0x1b8] sm:$0xff]
      %v394 = vld [vmem:[%s6 + $0x1c0] sm:$0xff]
      %v395 = vld [vmem:[%s6 + $0x1c8] sm:$0xff]
      %v396 = vld [vmem:[%s6 + $0x1d0] sm:$0xff]
      %v397 = vld [vmem:[%s6 + $0x1d8] sm:$0xff]
      %v398 = vld [vmem:[%s6 + $0x1e0] sm:$0xff]
      %v399 = vld [vmem:[%s6 + $0x1e8] sm:$0xff]
      %v400 = vld [vmem:[%s6 + $0x1f0] sm:$0xff]
      %v401 = vld [vmem:[%s6 + $0x1f8] sm:$0xff]
      %v402 = vld [vmem:[%s6 + $0x200] sm:$0xff]
      %v403 = vld [vmem:[%s6 + $0x208] sm:$0xff]
      %v404 = vld [vmem:[%s6 + $0x210] sm:$0xff]
      %v405 = vld [vmem:[%s6 + $0x218] sm:$0xff]
      %v406 = vld [vmem:[%s6 + $0x220] sm:$0xff]
      %v407 = vld [vmem:[%s6 + $0x228] sm:$0xff]
      %v408 = vld [vmem:[%s6 + $0x230] sm:$0xff]
      %v409 = vld [vmem:[%s6 + $0x238] sm:$0xff]
      %v410 = vld [vmem:[%s6 + $0x240] sm:$0xff]
      %v411 = vld [vmem:[%s6 + $0x248] sm:$0xff]
      %v412 = vld [vmem:[%s6 + $0x250] sm:$0xff]
      %v413 = vld [vmem:[%s6 + $0x258] sm:$0xff]
      %v414 = vld [vmem:[%s6 + $0x260] sm:$0xff]
      %v415 = vld [vmem:[%s6 + $0x268] sm:$0xff]
      %v416 = vld [vmem:[%s6 + $0x270] sm:$0xff]
      %v417 = vld [vmem:[%s6 + $0x278] sm:$0xff]
      %v418 = vld [vmem:[%s6 + $0x280] sm:$0xff]
      %v419 = vld [vmem:[%s6 + $0x288] sm:$0xff]
      %v420 = vld [vmem:[%s6 + $0x290] sm:$0xff]
      %v421 = vld [vmem:[%s6 + $0x298] sm:$0xff]
      %v422 = vld [vmem:[%s6 + $0x2a0] sm:$0xff]
      %v423 = vld [vmem:[%s6 + $0x2a8] sm:$0xff]
      %v424 = vld [vmem:[%s6 + $0x2b0] sm:$0xff]
      %v425 = vld [vmem:[%s6 + $0x2b8] sm:$0xff]
      %v426 = vld [vmem:[%s6 + $0x2c0] sm:$0xff]
      %v427 = vld [vmem:[%s6 + $0x2c8] sm:$0xff]
      %v428 = vld [vmem:[%s6 + $0x2d0] sm:$0xff]
      %v429 = vld [vmem:[%s6 + $0x2d8] sm:$0xff]
      %v430 = vld [vmem:[%s6 + $0x2e0] sm:$0xff]
      %v431 = vld [vmem:[%s6 + $0x2e8] sm:$0xff]
      %v432 = vld [vmem:[%s6 + $0x2f0] sm:$0xff]
      %v433 = vld [vmem:[%s6 + $0x2f8] sm:$0xff]
      %v434 = vld [vmem:[%s6 + $0x300] sm:$0xff]
      %v435 = vld [vmem:[%s6 + $0x308] sm:$0xff]
      %v436 = vld [vmem:[%s6 + $0x310] sm:$0xff]
      %v437 = vld [vmem:[%s6 + $0x318] sm:$0xff]
      %v438 = vld [vmem:[%s6 + $0x320] sm:$0xff]
      %v439 = vld [vmem:[%s6 + $0x328] sm:$0xff]
      %v440 = vld [vmem:[%s6 + $0x330] sm:$0xff]
      %v441 = vld [vmem:[%s6 + $0x338] sm:$0xff]
      %v442 = vld [vmem:[%s6 + $0x340] sm:$0xff]
      %v443 = vld [vmem:[%s6 + $0x348] sm:$0xff]
      %v444 = vld [vmem:[%s6 + $0x350] sm:$0xff]
      %v445 = vld [vmem:[%s6 + $0x358] sm:$0xff]
      %v446 = vld [vmem:[%s6 + $0x360] sm:$0xff]
      %v447 = vld [vmem:[%s6 + $0x368] sm:$0xff]
      %v448 = vld [vmem:[%s6 + $0x370] sm:$0xff]
      %v449 = vld [vmem:[%s6 + $0x378] sm:$0xff]
      %v450 = vld [vmem:[%s6 + $0x380] sm:$0xff]
      %v451 = vld [vmem:[%s6 + $0x388] sm:$0xff]
      %v452 = vld [vmem:[%s6 + $0x390] sm:$0xff]
      %v453 = vld [vmem:[%s6 + $0x398] sm:$0xff]
      %v454 = vld [vmem:[%s6 + $0x3a0] sm:$0xff]
      %v455 = vld [vmem:[%s6 + $0x3a8] sm:$0xff]
      %v456 = vld [vmem:[%s6 + $0x3b0] sm:$0xff]
      %v457 = vld [vmem:[%s6 + $0x3b8] sm:$0xff]
      %v458 = vld [vmem:[%s6 + $0x3c0] sm:$0xff]
      %v459 = vld [vmem:[%s6 + $0x3c8] sm:$0xff]
      %v460 = vld [vmem:[%s6 + $0x3d0] sm:$0xff]
      %v461 = vld [vmem:[%s6 + $0x3d8] sm:$0xff]
      %v462 = vld [vmem:[%s6 + $0x3e0] sm:$0xff]
      %v463 = vld [vmem:[%s6 + $0x3e8] sm:$0xff]
      %v464 = vld [vmem:[%s6 + $0x3f0] sm:$0xff]
      %v465 = vld [vmem:[%s6 + $0x3f8] sm:$0xff]
      %466 = vmatpush.msra.mxu0 %v368
      %467 = vmatpush.msra.mxu0 %v366
      %468 = vmatpush.msra.mxu0 %v364
      %469 = vmatpush.msra.mxu0 %v362
      %470 = vmatpush.msra.mxu0 %v360
      %471 = vmatpush.msra.mxu0 %v358
      %472 = vmatpush.msra.mxu0 %v356
      %473 = vmatpush.msra.mxu0 %v354
      %474 = vmatpush.msra.mxu0 %v352
      %475 = vmatpush.msra.mxu0 %v350
      %476 = vmatpush.msra.mxu0 %v348
      %477 = vmatpush.msra.mxu0 %v346
      %478 = vmatpush.msra.mxu0 %v344
      %479 = vmatpush.msra.mxu0 %v342
      %480 = vmatpush.msra.mxu0 %v340
      %481 = vmatpush.msra.mxu0 %v338
      %482 = vmatmul.f32.gmra.mxu0 %v334
      %v483 = vpop.f32.mrf.mxu0
      %v484 = vadd.f32 0.0, %v483
      %485 = vdwg.mxu0
      %486 = vmatpush.msra.mxu0 %v400
      %487 = vmatpush.msra.mxu0 %v398
      %488 = vmatpush.msra.mxu0 %v396
      %489 = vmatpush.msra.mxu0 %v394
      %490 = vmatpush.msra.mxu0 %v392
      %491 = vmatpush.msra.mxu0 %v390
      %492 = vmatpush.msra.mxu0 %v388
      %493 = vmatpush.msra.mxu0 %v386
      %494 = vmatpush.msra.mxu0 %v384
      %495 = vmatpush.msra.mxu0 %v382
      %496 = vmatpush.msra.mxu0 %v380
      %497 = vmatpush.msra.mxu0 %v378
      %498 = vmatpush.msra.mxu0 %v376
      %499 = vmatpush.msra.mxu0 %v374
      %500 = vmatpush.msra.mxu0 %v372
      %501 = vmatpush.msra.mxu0 %v370
      %502 = vmatmul.f32.gmra.mxu0 %v335
      %v503 = vpop.f32.mrf.mxu0
      %v504 = vadd.f32 %v484, %v503
      %505 = vdwg.mxu0
      %506 = vmatpush.msra.mxu0 %v432
      %507 = vmatpush.msra.mxu0 %v430
      %508 = vmatpush.msra.mxu0 %v428
      %509 = vmatpush.msra.mxu0 %v426
      %510 = vmatpush.msra.mxu0 %v424
      %511 = vmatpush.msra.mxu0 %v422
      %512 = vmatpush.msra.mxu0 %v420
      %513 = vmatpush.msra.mxu0 %v418
      %514 = vmatpush.msra.mxu0 %v416
      %515 = vmatpush.msra.mxu0 %v414
      %516 = vmatpush.msra.mxu0 %v412
      %517 = vmatpush.msra.mxu0 %v410
      %518 = vmatpush.msra.mxu0 %v408
      %519 = vmatpush.msra.mxu0 %v406
      %520 = vmatpush.msra.mxu0 %v404
      %521 = vmatpush.msra.mxu0 %v402
      %522 = vmatmul.f32.gmra.mxu0 %v336
      %v523 = vpop.f32.mrf.mxu0
      %v524 = vadd.f32 %v504, %v523
      %525 = vdwg.mxu0
      %526 = vmatpush.msra.mxu0 %v464
      %527 = vmatpush.msra.mxu0 %v462
      %528 = vmatpush.msra.mxu0 %v460
      %529 = vmatpush.msra.mxu0 %v458
      %530 = vmatpush.msra.mxu0 %v456
      %531 = vmatpush.msra.mxu0 %v454
      %532 = vmatpush.msra.mxu0 %v452
      %533 = vmatpush.msra.mxu0 %v450
      %534 = vmatpush.msra.mxu0 %v448
      %535 = vmatpush.msra.mxu0 %v446
      %536 = vmatpush.msra.mxu0 %v444
      %537 = vmatpush.msra.mxu0 %v442
      %538 = vmatpush.msra.mxu0 %v440
      %539 = vmatpush.msra.mxu0 %v438
      %540 = vmatpush.msra.mxu0 %v436
      %541 = vmatpush.msra.mxu0 %v434
      %542 = vmatmul.f32.gmra.mxu0 %v337
      %v543 = vpop.f32.mrf.mxu0
      %v544 = vadd.f32 %v524, %v543
      %545 = vdwg.mxu0
      %546 = vmatpush.msra.mxu0 %v369
      %547 = vmatpush.msra.mxu0 %v367
      %548 = vmatpush.msra.mxu0 %v365
      %549 = vmatpush.msra.mxu0 %v363
      %550 = vmatpush.msra.mxu0 %v361
      %551 = vmatpush.msra.mxu0 %v359
      %552 = vmatpush.msra.mxu0 %v357
      %553 = vmatpush.msra.mxu0 %v355
      %554 = vmatpush.msra.mxu0 %v353
      %555 = vmatpush.msra.mxu0 %v351
      %556 = vmatpush.msra.mxu0 %v349
      %557 = vmatpush.msra.mxu0 %v347
      %558 = vmatpush.msra.mxu0 %v345
      %559 = vmatpush.msra.mxu0 %v343
      %560 = vmatpush.msra.mxu0 %v341
      %561 = vmatpush.msra.mxu0 %v339
      %562 = vmatmul.f32.gmra.mxu0 %v334
      %v563 = vpop.f32.mrf.mxu0
      %v564 = vadd.f32 0.0, %v563
      %565 = vdwg.mxu0
      %566 = vmatpush.msra.mxu0 %v401
      %567 = vmatpush.msra.mxu0 %v399
      %568 = vmatpush.msra.mxu0 %v397
      %569 = vmatpush.msra.mxu0 %v395
      %570 = vmatpush.msra.mxu0 %v393
      %571 = vmatpush.msra.mxu0 %v391
      %572 = vmatpush.msra.mxu0 %v389
      %573 = vmatpush.msra.mxu0 %v387
      %574 = vmatpush.msra.mxu0 %v385
      %575 = vmatpush.msra.mxu0 %v383
      %576 = vmatpush.msra.mxu0 %v381
      %577 = vmatpush.msra.mxu0 %v379
      %578 = vmatpush.msra.mxu0 %v377
      %579 = vmatpush.msra.mxu0 %v375
      %580 = vmatpush.msra.mxu0 %v373
      %581 = vmatpush.msra.mxu0 %v371
      %582 = vmatmul.f32.gmra.mxu0 %v335
      %v583 = vpop.f32.mrf.mxu0
      %v584 = vadd.f32 %v564, %v583
      %585 = vdwg.mxu0
      %586 = vmatpush.msra.mxu0 %v433
      %587 = vmatpush.msra.mxu0 %v431
      %588 = vmatpush.msra.mxu0 %v429
      %589 = vmatpush.msra.mxu0 %v427
      %590 = vmatpush.msra.mxu0 %v425
      %591 = vmatpush.msra.mxu0 %v423
      %592 = vmatpush.msra.mxu0 %v421
      %593 = vmatpush.msra.mxu0 %v419
      %594 = vmatpush.msra.mxu0 %v417
      %595 = vmatpush.msra.mxu0 %v415
      %596 = vmatpush.msra.mxu0 %v413
      %597 = vmatpush.msra.mxu0 %v411
      %598 = vmatpush.msra.mxu0 %v409
      %599 = vmatpush.msra.mxu0 %v407
      %600 = vmatpush.msra.mxu0 %v405
      %601 = vmatpush.msra.mxu0 %v403
      %602 = vmatmul.f32.gmra.mxu0 %v336
      %v603 = vpop.f32.mrf.mxu0
      %v604 = vadd.f32 %v584, %v603
      %605 = vdwg.mxu0
      %606 = vmatpush.msra.mxu0 %v465
      %607 = vmatpush.msra.mxu0 %v463
      %608 = vmatpush.msra.mxu0 %v461
      %609 = vmatpush.msra.mxu0 %v459
      %610 = vmatpush.msra.mxu0 %v457
      %611 = vmatpush.msra.mxu0 %v455
      %612 = vmatpush.msra.mxu0 %v453
      %613 = vmatpush.msra.mxu0 %v451
      %614 = vmatpush.msra.mxu0 %v449
      %615 = vmatpush.msra.mxu0 %v447
      %616 = vmatpush.msra.mxu0 %v445
      %617 = vmatpush.msra.mxu0 %v443
      %618 = vmatpush.msra.mxu0 %v441
      %619 = vmatpush.msra.mxu0 %v439
      %620 = vmatpush.msra.mxu0 %v437
      %621 = vmatpush.msra.mxu0 %v435
      %622 = vmatmul.f32.gmra.mxu0 %v337
      %v623 = vpop.f32.mrf.mxu0
      %v624 = vadd.f32 %v604, %v623
      %625 = vdwg.mxu0
      %v628 = vrot.slane %v624, 6
      %v629 = vsel %vm154, %v544, %v628
      %631 = vst [vmem:[#allocation5] sm:$0xf] %v629
    $region33: #{resnet_forward.1} parent=1 // pred_fallthru
      _
    // Predicated region
    $region34: #{resnet_forward.1} parent=1 // pred_check
      _
    $region35: #{resnet_forward.1} parent=1 // pred_check_branch
      %633 = sbr.rel (0) target = $region37
    $region36: #{resnet_forward.1} parent=1 // pred_region
      %635 = vsyncadd [#allocation6], 0
      %s637 = sshll.u32 [#allocation5], 4
      %s638 = int_to_ptr.vmem [resolvable:$true] %s637
      %s639 = sshll.u32 %s7, 4
      %s640 = int_to_ptr.hbm [resolvable:$true] %s639
      %642 = dma.vmem_to_hbm [thread:$0]  %s638, 64, %s640, [#allocation6]
    $region37: #{resnet_forward.1} parent=1 // pred_fallthru
      _
    // Predicated region
    $region38: #{resnet_forward.1} parent=1 // pred_check
      _
    $region39: #{resnet_forward.1} parent=1 // pred_check_branch
      %644 = sbr.rel (0) target = $region41
    $region40: #{resnet_forward.1} parent=1 // pred_region
      %646 = dma.done [#allocation6], 64
    $region41: #{resnet_forward.1} parent=1 // pred_fallthru
      _
    %647 = vsyncpa [#allocation6], 1

</llo_original>
